<compile_context>
chip_gen: v5e
topology: v5e:2x2
jax: 0.10.0
libtpu: 0.0.40
codegen_flags: <defaults>
</compile_context>

<pallas_src>
import functools

import jax
import jax.numpy as jnp
from jax.experimental import pallas as pl
from jax.experimental.pallas import tpu as pltpu

_SUBLANE = 8
_LANE = 128
_TARGET_BLOCK_BYTES = 4 * 1024 * 1024   # ~4 MiB/block (review: 2-4 MiB sweet spot)
_MIN_PALLAS_BYTES = 2 * 1024 * 1024     # below this, plain XLA is cheaper


def _ei_sign_kernel(x_ref, o_ref, *, thresh, tile_l):
    """out = +x where global lane index < thresh (excitatory), else -x."""
    j = pl.program_id(1)
    # Global lane index of each element of this (tn, tl) block.  Fits int32
    # for any realistic activation width (L = C * spatial).
    lane = jax.lax.broadcasted_iota(jnp.int32, x_ref.shape, 1) + j * tile_l
    x = x_ref[...]
    o_ref[...] = jnp.where(lane < thresh, x, -x)


def _choose_tiles(n, l, itemsize, target_bytes):
    """Pick (tn, tl).  Every return is legal: each dim is either the full
    array dim or a multiple of (8, 128); partial edge blocks are masked."""
    row_bytes = l * itemsize
    if n * row_bytes <= target_bytes:
        return n, l                                  # single block
    if _SUBLANE * row_bytes <= target_bytes:
        tn = (target_bytes // row_bytes) // _SUBLANE * _SUBLANE
        return tn, l                                 # full rows, tile batch
    # Rows are huge: tile along lanes too (long contiguous row segments).
    tn = n if n < _SUBLANE else _SUBLANE
    tl = (target_bytes // (tn * itemsize)) // _LANE * _LANE
    return tn, max(_LANE, min(tl, l))


def ei_mask_forward(x, ne, ni, *, block_bytes=_TARGET_BLOCK_BYTES,
                    force_pallas=False):
    """Apply the signed E/I channel mask.  x: (N, C, ...) with C = ne + ni."""
    orig_shape = x.shape
    N, C = orig_shape[0], orig_shape[1]
    assert C == ne + ni, "channel dim must equal ne + ni"
    S = 1
    for d in orig_shape[2:]:
        S *= d
    L = C * S
    itemsize = x.dtype.itemsize

    # Tiny tensors: fixed pallas_call dispatch cost dominates -> let XLA fuse
    # the trivial multiply into its neighbors.
    if not force_pallas and N * L * itemsize < _MIN_PALLAS_BYTES:
        mask = jnp.concatenate(
            [jnp.ones((ne,), x.dtype), -jnp.ones((ni,), x.dtype)])
        return x * mask.reshape((1, C) + (1,) * (x.ndim - 2))

    # Lane-dense 2-D view; sign threshold in flattened (C, spatial) order.
    x2 = x.reshape(N, L)
    thresh = ne * S
    tn, tl = _choose_tiles(N, L, itemsize, block_bytes)
    grid = (pl.cdiv(N, tn), pl.cdiv(L, tl))

    out = pl.pallas_call(
        functools.partial(_ei_sign_kernel, thresh=thresh, tile_l=tl),
        out_shape=jax.ShapeDtypeStruct((N, L), x.dtype),
        grid_spec=pltpu.PrefetchScalarGridSpec(
            num_scalar_prefetch=0,
            grid=grid,
            in_specs=[pl.BlockSpec((tn, tl), lambda i, j: (i, j))],
            out_specs=pl.BlockSpec((tn, tl), lambda i, j: (i, j)),
        ),
        # Output aliases the flattened input: blocks are disjoint and each is
        # fully read (DMA'd to VMEM) before its writeback, so in-place is safe.
        input_output_aliases={0: 0},
        compiler_params=pltpu.CompilerParams(
            # Both axes independent -> shardable across v7x's two TensorCores.
            dimension_semantics=("parallel", "parallel"),
            # ~16 MiB buffered (4 MiB block x double-buffered in/out) + headroom;
            # safe on v7x (64 MiB physical) and trivially on v5e/v6e.
            vmem_limit_bytes=48 * 1024 * 1024,
        ),
    )(x2)

    return out.reshape(orig_shape)


class EiMask:
    """Mirror of the PyTorch module: EiMask(ni, ne)(x)."""

    def __init__(self, ni, ne):
        self.ni, self.ne = ni, ne

    def __call__(self, x, **kwargs):
        return ei_mask_forward(x, ne=self.ne, ni=self.ni, **kwargs)


def make_ei_mask(ni, ne, dtype=jnp.float32):
    # Matches torch.cat((ones((1, ne)), -ones((1, ni))), axis=1).squeeze()
    return jnp.concatenate(
        [jnp.ones((ne,), dtype), -jnp.ones((ni,), dtype)], axis=0)


def _reference(x, ne, ni):
    C = x.shape[1]
    mask = make_ei_mask(ni=ni, ne=ne, dtype=x.dtype)
    return x * mask.reshape((1, C) + (1,) * (x.ndim - 2))


if __name__ == "__main__":
    key = jax.random.PRNGKey(0)
    k1, k2, k3, k4 = jax.random.split(key, 4)

    # Case 1: NCHW conv-core activations (batch=2, channels=4 = ne 2 + ni 2, 16x16).
    x = jax.random.normal(k1, (2, 4, 16, 16), dtype=jnp.float32)
    want = _reference(x, ne=2, ni=2)
    got = jax.block_until_ready(ei_mask_forward(x, ne=2, ni=2, force_pallas=True))
    assert got.shape == x.shape and got.dtype == x.dtype
    assert jnp.allclose(got, want), "mismatch (NCHW)"

    # Case 2: pure-linear (N, C) model.
    xl = jax.random.normal(k2, (8, 32), dtype=jnp.float32)
    wantl = _reference(xl, ne=20, ni=12)
    gotl = jax.block_until_ready(ei_mask_forward(xl, ne=20, ni=12, force_pallas=True))
    assert jnp.allclose(gotl, wantl), "mismatch (linear)"

    # Case 3: odd spatial size (7x7 -> L = 196, not a multiple of 128).
    xo = jax.random.normal(k3, (2, 4, 7, 7), dtype=jnp.float32)
    wanto = _reference(xo, ne=2, ni=2)
    goto = jax.block_until_ready(ei_mask_forward(xo, ne=2, ni=2, force_pallas=True))
    assert jnp.allclose(goto, wanto), "mismatch (odd spatial)"

    # Case 4: force the multi-block lane-tiled path (tiny block budget) so the
    # iota/threshold sign logic and partial edge blocks are exercised.
    xt = jax.random.normal(k4, (10, 4, 9, 9), dtype=jnp.float32)
    wantt = _reference(xt, ne=1, ni=3)
    gott = jax.block_until_ready(
        ei_mask_forward(xt, ne=1, ni=3, force_pallas=True, block_bytes=4096))
    assert jnp.allclose(gott, wantt), "mismatch (tiled / partial blocks)"

    # Case 5: small-input short-circuit (plain XLA path via the module wrapper).
    m = EiMask(ni=2, ne=2)
    gots = jax.block_until_ready(m(x))
    assert jnp.allclose(gots, want), "mismatch (XLA fallback)"

    print("KERNEL_OK")
</pallas_src>

<mosaic_0001>
module attributes {stable_mosaic.version = 11 : i64} {
  func.func @_ei_sign_kernel(%arg0: i32, %arg1: i32, %arg2: memref<2x1024xf32, #tpu.memory_space<vmem>>, %arg3: memref<2x1024xf32, #tpu.memory_space<vmem>>) attributes {dimension_semantics = [#tpu.dimension_semantics<parallel>, #tpu.dimension_semantics<parallel>], iteration_bounds = array<i64: 1, 1>, scalar_prefetch = 0 : i64, scratch_operands = 0 : i64, tpu.core_type = #tpu.core_type<tc>, window_params = [{transform_indices = @transform_0, window_bounds = array<i64: 2, 1024>}, {transform_indices = @transform_1, window_bounds = array<i64: 2, 1024>}]} {
    %0 = tpu.iota {dimensions = array<i32: 1>} : vector<2x1024xi32>
    %c1024_i32 = arith.constant 1024 : i32
    %1 = arith.muli %arg1, %c1024_i32 : i32
    %2 = vector.broadcast %1 : i32 to vector<2x1024xi32>
    %3 = arith.addi %0, %2 : vector<2x1024xi32>
    %c0 = arith.constant 0 : index
    %c0_0 = arith.constant 0 : index
    %4 = vector.load %arg2[%c0, %c0_0] : memref<2x1024xf32, #tpu.memory_space<vmem>>, vector<2x1024xf32>
    %c512_i32 = arith.constant 512 : i32
    %5 = vector.broadcast %c512_i32 : i32 to vector<2x1024xi32>
    %6 = arith.cmpi slt, %3, %5 : vector<2x1024xi32>
    %cst = arith.constant 0.000000e+00 : f32
    %7 = vector.broadcast %cst : f32 to vector<2x1024xf32>
    %8 = arith.subf %7, %4 : vector<2x1024xf32>
    %9 = arith.select %6, %4, %8 : vector<2x1024xi1>, vector<2x1024xf32>
    %c0_1 = arith.constant 0 : index
    %c0_2 = arith.constant 0 : index
    %10 = vector.load %arg3[%c0_1, %c0_2] : memref<2x1024xf32, #tpu.memory_space<vmem>>, vector<2x1024xf32>
    tpu.vector_store %arg3[%c0_1, %c0_2], %9 {strides = array<i32>} : memref<2x1024xf32, #tpu.memory_space<vmem>>, vector<2x1024xf32>,
    return
  }
  func.func @transform_0(%arg0: i32, %arg1: i32) -> (i32, i32) {
    %c0_i32 = arith.constant 0 : i32
    return %arg0, %arg1 : i32, i32
  }
  func.func @transform_1(%arg0: i32, %arg1: i32) -> (i32, i32) {
    %c0_i32 = arith.constant 0 : i32
    return %arg0, %arg1 : i32, i32
  }
}

</mosaic_0001>

<llo_original>
// kernel: tpu_custom_call.1
$region0: #{tpu_custom_call.1}
  #allocation0 [shape = 'u32[]', space=smem, size = 0x4, offset = 0x4, fixed_abs, tag = 'smem constant byte address 0x4 - core index']
  #allocation1 [shape = 'u32[72,128]{1,0:T(1,128)}', space=vmem, size = 0x9000, scoped, tag = 'internal scratch']
  %s0 = inlined_call_operand.hbm [shape: f32[2,1024], index: 0, kind: input, shape index: {}, may-alias: {0,1}]
  %s1 = inlined_call_operand.hbm [shape: f32[2,1024], index: 1, kind: output, shape index: {}, may-alias: {0,1}]
  %s2 = sld [smem:[#allocation0]]
  $region18: #{tpu_custom_call.1} parent=0
    _
  %s4 = ssub.s32 1, %s2
  %s5 = scalar_select 0, %s4, %s2
  $region1: #{tpu_custom_call.1} parent=0
    #allocation2 [shape = 'u8[8192]{0}', space=vmem, size = 0x2000, scoped, tag = 'input window, operand 0, single buffered']
    #allocation3 [shape = 's32[1]{0}', space=sflag, size = 0x4, scoped, tag = 'scoped memory for tpu_custom_call.1']
    #allocation4 [shape = 's32[1]{0}', space=sflag, size = 0x4, scoped, tag = 'scoped memory for tpu_custom_call.1']
    #allocation5 [shape = 'u8[8192]{0}', space=vmem, size = 0x2000, scoped, tag = 'output window, operand 0, single buffered']
    %6 = vsyncpa [#allocation3], 0
    %7 = vsyncpa [#allocation4], 0
    // Predicated region
    $region2: #{tpu_custom_call.1} parent=1 // pred_check
      _
    $region3: #{tpu_custom_call.1} parent=1 // pred_check_branch
      %9 = sbr.rel (0) target = $region5
    $region4: #{tpu_custom_call.1} parent=1 // pred_region
      %11 = vsyncadd [#allocation3], 0
      %s13 = sshll.u32 %s0, 4
      %s14 = int_to_ptr.hbm [resolvable:$true] %s13
      %s15 = sshll.u32 [#allocation2], 4
      %s16 = int_to_ptr.vmem [resolvable:$true] %s15
      %18 = dma.hbm_to_vmem [thread:$0]  %s14, 256, %s16, [#allocation3]
    $region5: #{tpu_custom_call.1} parent=1 // pred_fallthru
      _
    // Predicated region
    $region6: #{tpu_custom_call.1} parent=1 // pred_check
      _
    $region7: #{tpu_custom_call.1} parent=1 // pred_check_branch
      %20 = sbr.rel (0) target = $region9
    $region8: #{tpu_custom_call.1} parent=1 // pred_region
      %22 = dma.done [#allocation3], 256
    $region9: #{tpu_custom_call.1} parent=1 // pred_fallthru
      _
    %v23 = vlaneseq
    %v24 = vand.u32 %v23, 127
    %v25 = vadd.s32 %v24, 128
    %v26 = vadd.s32 %v24, 256
    %v27 = vadd.s32 %v24, 384
    %v28 = vadd.s32 %v24, 512
    %v29 = vadd.s32 %v24, 640
    %v30 = vadd.s32 %v24, 768
    %v31 = vadd.s32 %v24, 896
    %s32 = smul.u32 0, 1024
    %v33 = vstv %s32
    %v34 = vadd.s32 %v24, %v33
    %v35 = vadd.s32 %v25, %v33
    %v36 = vadd.s32 %v26, %v33
    %v37 = vadd.s32 %v27, %v33
    %v38 = vadd.s32 %v28, %v33
    %v39 = vadd.s32 %v29, %v33
    %v40 = vadd.s32 %v30, %v33
    %v41 = vadd.s32 %v31, %v33
    %v42 = vld [vmem:[#allocation2] sm:$0xff]
    %v43 = vld [vmem:[#allocation2 + $0x8] sm:$0xff]
    %vm44 = vcmp.lt.s32.totalorder %v34, 512
    %vm45 = vcmp.lt.s32.totalorder %v35, 512
    %vm46 = vcmp.lt.s32.totalorder %v36, 512
    %vm47 = vcmp.lt.s32.totalorder %v37, 512
    %vm48 = vcmp.lt.s32.totalorder %v38, 512
    %vm49 = vcmp.lt.s32.totalorder %v39, 512
    %vm50 = vcmp.lt.s32.totalorder %v40, 512
    %vm51 = vcmp.lt.s32.totalorder %v41, 512
    %v52 = vsub.f32 0.0, %v42
    %v53 = vsub.f32 0.0, %v43
    %56 = vst [vmem:[#allocation1] ss:$4 sm:$0xff] %v42
    %s57 = scalar_lea.vmem [#allocation1], 32
    %58 = vst [vmem:[%s57] ss:$4 sm:$0xff] %v43
    %v59 = vld.sshfl [vmem:[#allocation1] sm:$0xff pattern:$0x73625140]
    %v60 = vld.sshfl [vmem:[#allocation1 + $0x8] sm:$0xff pattern:$0x73625140]
    %v61 = vld.sshfl [vmem:[#allocation1 + $0x10] sm:$0xff pattern:$0x73625140]
    %v62 = vld.sshfl [vmem:[#allocation1 + $0x18] sm:$0xff pattern:$0x73625140]
    %v63 = vld.sshfl [vmem:[#allocation1 + $0x20] sm:$0xff pattern:$0x73625140]
    %v64 = vld.sshfl [vmem:[#allocation1 + $0x28] sm:$0xff pattern:$0x73625140]
    %v65 = vld.sshfl [vmem:[#allocation1 + $0x30] sm:$0xff pattern:$0x73625140]
    %v66 = vld.sshfl [vmem:[#allocation1 + $0x38] sm:$0xff pattern:$0x73625140]
    %77 = vst [vmem:[#allocation1] ss:$4 sm:$0xff] %v52
    %s78 = scalar_lea.vmem [#allocation1], 32
    %79 = vst [vmem:[%s78] ss:$4 sm:$0xff] %v53
    %v80 = vld.sshfl [vmem:[#allocation1] sm:$0xff pattern:$0x73625140]
    %v81 = vld.sshfl [vmem:[#allocation1 + $0x8] sm:$0xff pattern:$0x73625140]
    %v82 = vld.sshfl [vmem:[#allocation1 + $0x10] sm:$0xff pattern:$0x73625140]
    %v83 = vld.sshfl [vmem:[#allocation1 + $0x18] sm:$0xff pattern:$0x73625140]
    %v84 = vld.sshfl [vmem:[#allocation1 + $0x20] sm:$0xff pattern:$0x73625140]
    %v85 = vld.sshfl [vmem:[#allocation1 + $0x28] sm:$0xff pattern:$0x73625140]
    %v86 = vld.sshfl [vmem:[#allocation1 + $0x30] sm:$0xff pattern:$0x73625140]
    %v87 = vld.sshfl [vmem:[#allocation1 + $0x38] sm:$0xff pattern:$0x73625140]
    %v96 = vsel %vm44, %v59, %v80
    %v97 = vsel %vm45, %v60, %v81
    %v98 = vsel %vm46, %v61, %v82
    %v99 = vsel %vm47, %v62, %v83
    %v100 = vsel %vm48, %v63, %v84
    %v101 = vsel %vm49, %v64, %v85
    %v102 = vsel %vm50, %v65, %v86
    %v103 = vsel %vm51, %v66, %v87
    %v112 = vrot.slane %v97, 6
    %v113 = vrot.slane %v98, 4
    %v114 = vrot.slane %v99, 2
    %v115 = vrot.slane %v101, 6
    %v116 = vrot.slane %v102, 4
    %v117 = vrot.slane %v103, 2
    %vm118 = vcmask 1041408
    %v119 = vsel %vm118, %v96, %v112
    %vm120 = vcmask 1045508
    %v121 = vsel %vm120, %v113, %v114
    %vm122 = vcmask 1043456
    %v123 = vsel %vm122, %v119, %v121
    %v124 = vsel %vm118, %v100, %v115
    %v125 = vsel %vm120, %v116, %v117
    %v126 = vsel %vm122, %v124, %v125
    %129 = vst [vmem:[#allocation5] sm:$0xff] %v123
    %130 = vst [vmem:[#allocation5 + $0x8] sm:$0xff] %v126
    // Predicated region
    $region10: #{tpu_custom_call.1} parent=1 // pred_check
      _
    $region11: #{tpu_custom_call.1} parent=1 // pred_check_branch
      %132 = sbr.rel (0) target = $region13
    $region12: #{tpu_custom_call.1} parent=1 // pred_region
      %134 = vsyncadd [#allocation4], 0
      %s136 = sshll.u32 [#allocation5], 4
      %s137 = int_to_ptr.vmem [resolvable:$true] %s136
      %s138 = sshll.u32 %s1, 4
      %s139 = int_to_ptr.hbm [resolvable:$true] %s138
      %141 = dma.vmem_to_hbm [thread:$0]  %s137, 256, %s139, [#allocation4]
    $region13: #{tpu_custom_call.1} parent=1 // pred_fallthru
      _
    // Predicated region
    $region14: #{tpu_custom_call.1} parent=1 // pred_check
      _
    $region15: #{tpu_custom_call.1} parent=1 // pred_check_branch
      %143 = sbr.rel (0) target = $region17
    $region16: #{tpu_custom_call.1} parent=1 // pred_region
      %145 = dma.done [#allocation4], 256
    $region17: #{tpu_custom_call.1} parent=1 // pred_fallthru
      _
    %146 = vsyncpa [#allocation3], 1
    %147 = vsyncpa [#allocation4], 1

</llo_original>
